<compile_context>
chip_gen: v6e
topology: v6e:2x2x1
jax: 0.10.0
libtpu: 0.0.40
codegen_flags: <defaults>
</compile_context>

<pallas_src>
import math

import jax
import jax.numpy as jnp
import numpy as np
from jax.experimental import pallas as pl
from jax.experimental.pallas import tpu as pltpu

LANES = 128


def _round_up(x, m):
    return (x + m - 1) // m * m


def dncm_kernel(m_ref, i_ref, o_ref):
    # m_ref: (bs, 9) f32 in SMEM; per-image row-major 3x3 (M[r, c] at 3*r + c).
    # i_ref / o_ref: (1, 3, S, 128) VMEM blocks (one image's pixel tile,
    # channel-major, each channel plane a dense (S, 128) slab).
    b = pl.program_id(0)
    x0 = i_ref[0, 0]                       # (S, 128)
    x1 = i_ref[0, 1]
    x2 = i_ref[0, 2]
    # One fused expression region: 3 loads, 9 scalar-broadcast FMAs, 3 stores.
    y0 = m_ref[b, 0] * x0 + m_ref[b, 3] * x1 + m_ref[b, 6] * x2
    y1 = m_ref[b, 1] * x0 + m_ref[b, 4] * x1 + m_ref[b, 7] * x2
    y2 = m_ref[b, 2] * x0 + m_ref[b, 5] * x1 + m_ref[b, 8] * x2
    o_ref[0, 0] = y0.astype(o_ref.dtype)
    o_ref[0, 1] = y1.astype(o_ref.dtype)
    o_ref[0, 2] = y2.astype(o_ref.dtype)


def dncm_forward(I, T, P, Q, *, block_rows=2048):
    """I: (bs, 3, H, W), T: (bs, k*k), P: (3, k), Q: (k, 3)."""
    bs, C, H, W = I.shape
    assert C == 3
    k = P.shape[1]
    HW = H * W

    # Hoist the tiny per-image 3x3 transform out of the streaming kernel.
    T_mat = T.reshape(bs, k, k)
    M = jnp.einsum("ck,bkj,jd->bcd", P, T_mat, Q,
                   precision=jax.lax.Precision.HIGHEST).astype(jnp.float32)
    M_flat = M.reshape(bs, 9)

    # Lane-dense pixel layout (bs, 3, rows, 128).
    #  * HW % 128 == 0: zero-copy reshape, no pad, no output slice.
    #  * ragged HW: pad rows only up to the next multiple of 8 (not of S).
    if HW % LANES == 0:
        rows = HW // LANES
        pad = 0
        I_blk = I.reshape(bs, 3, rows, LANES)
    else:
        rows = _round_up(pl.cdiv(HW, LANES), 8)
        pad = rows * LANES - HW
        I_flat = jnp.pad(I.reshape(bs, 3, HW), ((0, 0), (0, 0), (0, pad)))
        I_blk = I_flat.reshape(bs, 3, rows, LANES)

    # Row-block size S (multiple of 8): the last block may overhang `rows`;
    # Pallas masks the out-of-bounds writes so no padding to S is needed.
    S = min(block_rows, _round_up(rows, 8))
    # Keep at least ~4 blocks in the grid so both v7x TensorCores get work.
    while S > 8 and bs * pl.cdiv(rows, S) < 4:
        S = _round_up(max(8, S // 2), 8)
    if rows < S:
        S = rows  # single full-extent block (legal even if rows % 8 != 0)
    grid = (bs, pl.cdiv(rows, S))

    itemsize = jnp.dtype(I.dtype).itemsize
    out_blk = pl.pallas_call(
        dncm_kernel,
        out_shape=jax.ShapeDtypeStruct((bs, 3, rows, LANES), I.dtype),
        grid_spec=pltpu.PrefetchScalarGridSpec(
            num_scalar_prefetch=0,
            grid=grid,
            in_specs=[
                # Per-image 3x3 matrices, flattened; whole array in SMEM.
                pl.BlockSpec(memory_space=pltpu.MemorySpace.SMEM),
                # Streaming pixel blocks (lane-dense, full sublane occupancy).
                pl.BlockSpec((1, 3, S, LANES), lambda b, j: (b, 0, j, 0)),
            ],
            out_specs=pl.BlockSpec((1, 3, S, LANES), lambda b, j: (b, 0, j, 0)),
        ),
        compiler_params=pltpu.CompilerParams(
            dimension_semantics=("parallel", "parallel"),
            vmem_limit_bytes=32 * 1024 * 1024,
        ),
        cost_estimate=pl.CostEstimate(
            flops=15 * bs * HW,
            transcendentals=0,
            bytes_accessed=2 * bs * 3 * HW * itemsize,
        ),
    )(M_flat, I_blk)

    if pad:
        return out_blk.reshape(bs, 3, rows * LANES)[:, :, :HW].reshape(bs, 3, H, W)
    return out_blk.reshape(bs, 3, H, W)


def init_params(key, k=16):
    # Deterministic kaiming_normal_ equivalent (fan_in mode, gain=sqrt(2)).
    kp, kq = jax.random.split(key)
    std_p = math.sqrt(2.0 / k)    # P: (3, k), fan_in = k
    std_q = math.sqrt(2.0 / 3.0)  # Q: (k, 3), fan_in = 3
    P = jax.random.normal(kp, (3, k), dtype=jnp.float32) * std_p
    Q = jax.random.normal(kq, (k, 3), dtype=jnp.float32) * std_q
    return P, Q


def dncm_reference(I, T, P, Q):
    bs, _, H, W = I.shape
    k = P.shape[1]
    I_px = I.reshape(bs, 3, H * W).transpose(0, 2, 1)   # (bs, HW, 3)
    T_mat = T.reshape(bs, k, k)
    Y = jnp.einsum("bnc,ck,bkj,jd->bnd", I_px, P, T_mat, Q,
                   precision=jax.lax.Precision.HIGHEST)
    return Y.reshape(bs, H, W, 3).transpose(0, 3, 1, 2)


if __name__ == "__main__":
    key = jax.random.PRNGKey(0)
    k = 16
    P, Q = init_params(jax.random.fold_in(key, 0), k=k)

    # Case 1: small lane-aligned spatial size (single full-extent block).
    # Case 2: ragged spatial size exercising the small-pad + tail-slice path.
    # Case 3: aligned size with a tiny block_rows so the grid has several row
    #         blocks and the last one overhangs (masked out-of-bounds writes).
    cases = [
        ((2, 16, 16), {}),
        ((2, 17, 19), {}),
        ((2, 48, 48), {"block_rows": 16}),
    ]
    for case, ((bs, H, W), kwargs) in enumerate(cases):
        k_img, k_t = jax.random.split(jax.random.fold_in(key, case + 1))
        I = jax.random.normal(k_img, (bs, 3, H, W), dtype=jnp.float32)
        T = jax.random.normal(k_t, (bs, k * k), dtype=jnp.float32)

        out = dncm_forward(I, T, P, Q, **kwargs)
        out = jax.block_until_ready(out)

        ref = dncm_reference(I, T, P, Q)
        np.testing.assert_allclose(np.asarray(out), np.asarray(ref),
                                   rtol=1e-4, atol=1e-4)

    print("KERNEL_OK")
</pallas_src>

<mosaic_0001>
module attributes {stable_mosaic.version = 11 : i64} {
  func.func @dncm_kernel(%arg0: i32, %arg1: i32, %arg2: memref<2x9xf32, #tpu.memory_space<smem>>, %arg3: memref<1x3x2x128xf32, #tpu.memory_space<vmem>>, %arg4: memref<1x3x2x128xf32, #tpu.memory_space<vmem>>) attributes {dimension_semantics = [#tpu.dimension_semantics<parallel>, #tpu.dimension_semantics<parallel>], iteration_bounds = array<i64: 2, 1>, scalar_prefetch = 0 : i64, scratch_operands = 0 : i64, tpu.core_type = #tpu.core_type<tc>, window_params = [{transform_indices = @transform_0, window_bounds = array<i64: 2, 9>}, {transform_indices = @transform_1, window_bounds = array<i64: 1, 3, 2, 128>}, {transform_indices = @transform_2, window_bounds = array<i64: 1, 3, 2, 128>}]} {
    %c0 = arith.constant 0 : index
    %c0_0 = arith.constant 0 : index
    %c0_1 = arith.constant 0 : index
    %c0_2 = arith.constant 0 : index
    %0 = vector.load %arg3[%c0, %c0_0, %c0_1, %c0_2] : memref<1x3x2x128xf32, #tpu.memory_space<vmem>>, vector<1x1x2x128xf32>
    %1 = vector.shape_cast %0 : vector<1x1x2x128xf32> to vector<2x128xf32>
    %c0_3 = arith.constant 0 : index
    %c1 = arith.constant 1 : index
    %c0_4 = arith.constant 0 : index
    %c0_5 = arith.constant 0 : index
    %2 = vector.load %arg3[%c0_3, %c1, %c0_4, %c0_5] : memref<1x3x2x128xf32, #tpu.memory_space<vmem>>, vector<1x1x2x128xf32>
    %3 = vector.shape_cast %2 : vector<1x1x2x128xf32> to vector<2x128xf32>
    %c0_6 = arith.constant 0 : index
    %c2 = arith.constant 2 : index
    %c0_7 = arith.constant 0 : index
    %c0_8 = arith.constant 0 : index
    %4 = vector.load %arg3[%c0_6, %c2, %c0_7, %c0_8] : memref<1x3x2x128xf32, #tpu.memory_space<vmem>>, vector<1x1x2x128xf32>
    %5 = vector.shape_cast %4 : vector<1x1x2x128xf32> to vector<2x128xf32>
    %6 = arith.index_cast %arg0 : i32 to index
    %c0_9 = arith.constant 0 : index
    %7 = memref.load %arg2[%6, %c0_9] : memref<2x9xf32, #tpu.memory_space<smem>>
    %8 = vector.broadcast %7 : f32 to vector<2x128xf32>
    %9 = arith.mulf %8, %1 : vector<2x128xf32>
    %10 = arith.index_cast %arg0 : i32 to index
    %c3 = arith.constant 3 : index
    %11 = memref.load %arg2[%10, %c3] : memref<2x9xf32, #tpu.memory_space<smem>>
    %12 = vector.broadcast %11 : f32 to vector<2x128xf32>
    %13 = arith.mulf %12, %3 : vector<2x128xf32>
    %14 = arith.addf %9, %13 : vector<2x128xf32>
    %15 = arith.index_cast %arg0 : i32 to index
    %c6 = arith.constant 6 : index
    %16 = memref.load %arg2[%15, %c6] : memref<2x9xf32, #tpu.memory_space<smem>>
    %17 = vector.broadcast %16 : f32 to vector<2x128xf32>
    %18 = arith.mulf %17, %5 : vector<2x128xf32>
    %19 = arith.addf %14, %18 : vector<2x128xf32>
    %20 = arith.index_cast %arg0 : i32 to index
    %c1_10 = arith.constant 1 : index
    %21 = memref.load %arg2[%20, %c1_10] : memref<2x9xf32, #tpu.memory_space<smem>>
    %22 = vector.broadcast %21 : f32 to vector<2x128xf32>
    %23 = arith.mulf %22, %1 : vector<2x128xf32>
    %24 = arith.index_cast %arg0 : i32 to index
    %c4 = arith.constant 4 : index
    %25 = memref.load %arg2[%24, %c4] : memref<2x9xf32, #tpu.memory_space<smem>>
    %26 = vector.broadcast %25 : f32 to vector<2x128xf32>
    %27 = arith.mulf %26, %3 : vector<2x128xf32>
    %28 = arith.addf %23, %27 : vector<2x128xf32>
    %29 = arith.index_cast %arg0 : i32 to index
    %c7 = arith.constant 7 : index
    %30 = memref.load %arg2[%29, %c7] : memref<2x9xf32, #tpu.memory_space<smem>>
    %31 = vector.broadcast %30 : f32 to vector<2x128xf32>
    %32 = arith.mulf %31, %5 : vector<2x128xf32>
    %33 = arith.addf %28, %32 : vector<2x128xf32>
    %34 = arith.index_cast %arg0 : i32 to index
    %c2_11 = arith.constant 2 : index
    %35 = memref.load %arg2[%34, %c2_11] : memref<2x9xf32, #tpu.memory_space<smem>>
    %36 = vector.broadcast %35 : f32 to vector<2x128xf32>
    %37 = arith.mulf %36, %1 : vector<2x128xf32>
    %38 = arith.index_cast %arg0 : i32 to index
    %c5 = arith.constant 5 : index
    %39 = memref.load %arg2[%38, %c5] : memref<2x9xf32, #tpu.memory_space<smem>>
    %40 = vector.broadcast %39 : f32 to vector<2x128xf32>
    %41 = arith.mulf %40, %3 : vector<2x128xf32>
    %42 = arith.addf %37, %41 : vector<2x128xf32>
    %43 = arith.index_cast %arg0 : i32 to index
    %c8 = arith.constant 8 : index
    %44 = memref.load %arg2[%43, %c8] : memref<2x9xf32, #tpu.memory_space<smem>>
    %45 = vector.broadcast %44 : f32 to vector<2x128xf32>
    %46 = arith.mulf %45, %5 : vector<2x128xf32>
    %47 = arith.addf %42, %46 : vector<2x128xf32>
    %c0_12 = arith.constant 0 : index
    %c0_13 = arith.constant 0 : index
    %c0_14 = arith.constant 0 : index
    %c0_15 = arith.constant 0 : index
    %48 = vector.load %arg4[%c0_12, %c0_13, %c0_14, %c0_15] : memref<1x3x2x128xf32, #tpu.memory_space<vmem>>, vector<1x1x2x128xf32>
    %49 = vector.shape_cast %48 : vector<1x1x2x128xf32> to vector<2x128xf32>
    %50 = vector.shape_cast %19 : vector<2x128xf32> to vector<1x1x2x128xf32>
    tpu.vector_store %arg4[%c0_12, %c0_13, %c0_14, %c0_15], %50 {strides = array<i32>} : memref<1x3x2x128xf32, #tpu.memory_space<vmem>>, vector<1x1x2x128xf32>,
    %c0_16 = arith.constant 0 : index
    %c1_17 = arith.constant 1 : index
    %c0_18 = arith.constant 0 : index
    %c0_19 = arith.constant 0 : index
    %51 = vector.load %arg4[%c0_16, %c1_17, %c0_18, %c0_19] : memref<1x3x2x128xf32, #tpu.memory_space<vmem>>, vector<1x1x2x128xf32>
    %52 = vector.shape_cast %51 : vector<1x1x2x128xf32> to vector<2x128xf32>
    %53 = vector.shape_cast %33 : vector<2x128xf32> to vector<1x1x2x128xf32>
    tpu.vector_store %arg4[%c0_16, %c1_17, %c0_18, %c0_19], %53 {strides = array<i32>} : memref<1x3x2x128xf32, #tpu.memory_space<vmem>>, vector<1x1x2x128xf32>,
    %c0_20 = arith.constant 0 : index
    %c2_21 = arith.constant 2 : index
    %c0_22 = arith.constant 0 : index
    %c0_23 = arith.constant 0 : index
    %54 = vector.load %arg4[%c0_20, %c2_21, %c0_22, %c0_23] : memref<1x3x2x128xf32, #tpu.memory_space<vmem>>, vector<1x1x2x128xf32>
    %55 = vector.shape_cast %54 : vector<1x1x2x128xf32> to vector<2x128xf32>
    %56 = vector.shape_cast %47 : vector<2x128xf32> to vector<1x1x2x128xf32>
    tpu.vector_store %arg4[%c0_20, %c2_21, %c0_22, %c0_23], %56 {strides = array<i32>} : memref<1x3x2x128xf32, #tpu.memory_space<vmem>>, vector<1x1x2x128xf32>,
    return
  }
  func.func @transform_0(%arg0: i32, %arg1: i32) -> (i32, i32) {
    %c0_i32 = arith.constant 0 : i32
    %c0_i32_0 = arith.constant 0 : i32
    %c0_i32_1 = arith.constant 0 : i32
    return %c0_i32, %c0_i32_0 : i32, i32
  }
  func.func @transform_1(%arg0: i32, %arg1: i32) -> (i32, i32, i32, i32) {
    %c0_i32 = arith.constant 0 : i32
    %c0_i32_0 = arith.constant 0 : i32
    %c0_i32_1 = arith.constant 0 : i32
    return %arg0, %c0_i32, %arg1, %c0_i32_0 : i32, i32, i32, i32
  }
  func.func @transform_2(%arg0: i32, %arg1: i32) -> (i32, i32, i32, i32) {
    %c0_i32 = arith.constant 0 : i32
    %c0_i32_0 = arith.constant 0 : i32
    %c0_i32_1 = arith.constant 0 : i32
    return %arg0, %c0_i32, %arg1, %c0_i32_0 : i32, i32, i32, i32
  }
}

</mosaic_0001>

<llo_original>
// kernel: tpu_custom_call.1
$region0: #{tpu_custom_call.1}
  #allocation0 [shape = 'u32[]', space=smem, size = 0x4, offset = 0x4, fixed_abs, tag = 'smem constant byte address 0x4 - core index']
  #allocation1 [shape = 'u32[144,128]{1,0:T(1,128)}', space=vmem, size = 0x12000, scoped, tag = 'internal scratch']
  %s0 = inlined_call_operand.hbm [shape: f32[2,9], index: 0, kind: input, shape index: {}]
  %s1 = inlined_call_operand.hbm [shape: f32[2,3,2,128], index: 1, kind: input, shape index: {}]
  %s2 = inlined_call_operand.hbm [shape: f32[2,3,2,128], index: 2, kind: output, shape index: {}]
  %s3 = sld [smem:[#allocation0]]
  $region49: #{tpu_custom_call.1} parent=0
    _
  %s5 = ssub.s32 1, %s3
  %s6 = scalar_select 0, %s5, %s3
  $region1: #{tpu_custom_call.1} parent=0
    #allocation2 [shape = 'u8[1024]{0}', space=smem, size = 0x400, scoped, tag = 'input window, operand 0, single buffered']
    #allocation3 [shape = 's32[2]{0}', space=sflag, size = 0x8, scoped, tag = 'scoped memory for tpu_custom_call.1']
    #allocation4 [shape = 's32[2]{0}', space=sflag, size = 0x8, scoped, tag = 'scoped memory for tpu_custom_call.1']
    #allocation5 [shape = 's32[2]{0}', space=sflag, size = 0x8, scoped, tag = 'scoped memory for tpu_custom_call.1']
    #allocation6 [shape = 'u8[6144]{0}', space=vmem, size = 0x1800, scoped, tag = 'input window, operand 1']
    #allocation7 [shape = 'u8[6144]{0}', space=vmem, size = 0x1800, scoped, tag = 'output window, operand 0']
    %7 = vsyncpa [#allocation5], 0
    %8 = vsyncpa [#allocation3], 0
    %s9 = scalar_lea.sflag [#allocation3], 1
    %10 = vsyncpa %s9, 0
    %11 = vsyncpa [#allocation4], 0
    %s12 = scalar_lea.sflag [#allocation4], 1
    %13 = vsyncpa %s12, 0
    loop: start=0, step=1, limit=4
    $region2: #{tpu_custom_call.1} parent=1 // loop_pre_header
      _
    $region3: #{tpu_custom_call.1} parent=1 // loop_header
      %s15 = sphi 0, %s19
      %p16 = scmp.ge.s32.totalorder %s15, 4
      %s22 = sphi 0, %s34
      %s23 = sphi 0, %s30
      %s24 = sphi 0, %s22
      %s25 = sphi 0, %s23
      %s26 = sphi 0, %s24
      %s27 = sphi 0, %s25
      %s35 = sphi 0, %s35
      %s37 = sphi 0, %s35
      %s38 = sphi 0, %s37
      %s52 = sphi 0, %s38
      %s60 = sphi 0, %s62
      %s63 = sphi 0, %s60
      %s64 = sphi 0, %s63
      %s80 = sphi 0, %s64
      %s88 = sphi 0, %s90
      %s91 = sphi 0, %s88
      %s92 = sphi 0, %s91
      %s108 = sphi 0, %s92
    $region4: #{tpu_custom_call.1} parent=1 // loop_header_branch
      %18 = sbr.rel (%p16) target = $region8
    $region5: #{tpu_custom_call.1} parent=1 // loop_body
      %s20 = ssub.s32 %s15, 1
      %s21 = ssub.s32 %s15, 2
      %s28 = sadd.s32 1, %s23
      %p29 = scmp.ge.s32.totalorder %s28, 1
      %s30 = scalar_select %p29, 0, %s28
      %s31 = sadd.s32 1, %s22
      %s32 = scalar_select %p29, %s31, %s22
      %p33 = scmp.ge.s32.totalorder %s32, 2
      %s34 = scalar_select %p33, 0, %s32
      %s36 = sadd.s32 %s35, 1
      %p39 = scmp.eq.s32.totalorder %s15, 1
      %p40 = scmp.ne.s32.totalorder %s35, %s37
      %p41 = scmp.eq.s32.totalorder %s15, 0
      %p42 = por %p40, %p41
      %p43 = scmp.ne.s32.totalorder %s35, %s37
      %p44 = scmp.eq.s32.totalorder %s20, 1
      %p45 = por %p43, %p44
      %p46 = scmp.ne.s32.totalorder %s37, %s38
      %p47 = scmp.eq.s32.totalorder %s20, 0
      %p48 = por %p46, %p47
      %p49 = scmp.ne.s32.totalorder %s37, %s38
      %p50 = scmp.eq.s32.totalorder %s21, 1
      %p51 = por %p49, %p50
      %p53 = scmp.ne.s32.totalorder %s38, %s52
      %p54 = scmp.eq.s32.totalorder %s21, 0
      %p55 = por %p53, %p54
      %s56 = ssub.s32 %s22, %s34
      %s57 = ssub.s32 %s23, %s30
      %s58 = sor.u32 %s56, %s57
      %p59 = scmp.eq.s32.totalorder %s58, 0
      %s61 = sadd.s32 %s60, 1
      %s62 = scalar_select %p59, %s60, %s61
      %p65 = pneg %p59
      %p66 = scmp.eq.s32.totalorder %s15, 1
      %p67 = por %p65, %p66
      %p68 = scmp.ne.s32.totalorder %s60, %s63
      %p69 = scmp.eq.s32.totalorder %s15, 0
      %p70 = por %p68, %p69
      %p71 = scmp.ne.s32.totalorder %s60, %s63
      %p72 = scmp.eq.s32.totalorder %s20, 1
      %p73 = por %p71, %p72
      %p74 = scmp.ne.s32.totalorder %s63, %s64
      %p75 = scmp.eq.s32.totalorder %s20, 0
      %p76 = por %p74, %p75
      %p77 = scmp.ne.s32.totalorder %s63, %s64
      %p78 = scmp.eq.s32.totalorder %s21, 1
      %p79 = por %p77, %p78
      %p81 = scmp.ne.s32.totalorder %s64, %s80
      %p82 = scmp.eq.s32.totalorder %s21, 0
      %p83 = por %p81, %p82
      %s84 = ssub.s32 %s22, %s34
      %s85 = ssub.s32 %s23, %s30
      %s86 = sor.u32 %s84, %s85
      %p87 = scmp.eq.s32.totalorder %s86, 0
      %s89 = sadd.s32 %s88, 1
      %s90 = scalar_select %p87, %s88, %s89
      %p93 = pneg %p87
      %p94 = scmp.eq.s32.totalorder %s15, 1
      %p95 = por %p93, %p94
      %p96 = scmp.ne.s32.totalorder %s88, %s91
      %p97 = scmp.eq.s32.totalorder %s15, 0
      %p98 = por %p96, %p97
      %p99 = scmp.ne.s32.totalorder %s88, %s91
      %p100 = scmp.eq.s32.totalorder %s20, 1
      %p101 = por %p99, %p100
      %p102 = scmp.ne.s32.totalorder %s91, %s92
      %p103 = scmp.eq.s32.totalorder %s20, 0
      %p104 = por %p102, %p103
      %p105 = scmp.ne.s32.totalorder %s91, %s92
      %p106 = scmp.eq.s32.totalorder %s21, 1
      %p107 = por %p105, %p106
      %p109 = scmp.ne.s32.totalorder %s92, %s108
      %p110 = scmp.eq.s32.totalorder %s21, 0
      %p111 = por %p109, %p110
      %p112 = scmp.le.s32.totalorder 1, %s15
      %p113 = scmp.lt.s32.totalorder %s15, 3
      %p114 = pnand %p112, %p113
      %p115 = pneg %p114
      // Predicated region
      $region9: #{tpu_custom_call.1} parent=5 // pred_check
        _
      $region10: #{tpu_custom_call.1} parent=5 // pred_check_branch
        %117 = sbr.rel (%p114) target = $region12
      $region11: #{tpu_custom_call.1} parent=5 // pred_region
        %s118 = ssub.s32 %s15, 1
        // Predicated region
        $region13: #{tpu_custom_call.1} parent=11 // pred_check
          %p119 = pneg %p48
        $region14: #{tpu_custom_call.1} parent=11 // pred_check_branch
          %121 = sbr.rel (%p119) target = $region16
        $region15: #{tpu_custom_call.1} parent=11 // pred_region
          %s123 = ssub.s32 32, 32
          %124 = vsyncadd [#allocation5], %s123
          %127 = dma.hbm_to_smem %s0, 32, [#allocation2], [#allocation5]
        $region16: #{tpu_custom_call.1} parent=11 // pred_fallthru
          _
      $region12: #{tpu_custom_call.1} parent=5 // pred_fallthru
        _
      %p128 = scmp.lt.s32.totalorder %s15, 2
      // Predicated region
      $region17: #{tpu_custom_call.1} parent=5 // pred_check
        %p129 = pneg %p128
      $region18: #{tpu_custom_call.1} parent=5 // pred_check_branch
        %131 = sbr.rel (%p129) target = $region20
      $region19: #{tpu_custom_call.1} parent=5 // pred_region
        // Predicated region
        $region21: #{tpu_custom_call.1} parent=19 // pred_check
          %p132 = pneg %p70
        $region22: #{tpu_custom_call.1} parent=19 // pred_check_branch
          %134 = sbr.rel (%p132) target = $region24
        $region23: #{tpu_custom_call.1} parent=19 // pred_region
          %s135 = sand.u32 %s60, 1
          %s136 = scalar_lea.sflag [#allocation3], %s135
          %s137 = sand.u32 %s60, 1
          %s138 = smul.addr %s137, 6
          %s139 = scalar_lea.vmem [#allocation6], %s138
          %s141 = ssub.s32 96, 96
          %142 = vsyncadd %s136, %s141
          %s143 = smul.addr %s22, 3
          %s144 = sadd.s32 %s23, %s143
          %s145 = smul.addr %s144, 32
          %s146 = scalar_lea.hbm %s1, %s145
          %s147 = sshll.u32 %s139, 4
          %s148 = int_to_ptr.vmem [resolvable:$true] %s147
          %153 = dma.hbm_to_vmem [thread:$0]  %s146, 96, %s148, %s136, 32, 32, 2
        $region24: #{tpu_custom_call.1} parent=19 // pred_fallthru
          _
      $region20: #{tpu_custom_call.1} parent=5 // pred_fallthru
        _
      %p154 = scmp.le.s32.totalorder 1, %s15
      %p155 = scmp.lt.s32.totalorder %s15, 3
      %p156 = pnand %p154, %p155
      %p157 = pneg %p156
      // Predicated region
      $region25: #{tpu_custom_call.1} parent=5 // pred_check
        _
      $region26: #{tpu_custom_call.1} parent=5 // pred_check_branch
        %159 = sbr.rel (%p156) target = $region28
      $region27: #{tpu_custom_call.1} parent=5 // pred_region
        %s160 = ssub.s32 %s15, 1
        // Predicated region
        $region29: #{tpu_custom_call.1} parent=27 // pred_check
          %p161 = pneg %p48
        $region30: #{tpu_custom_call.1} parent=27 // pred_check_branch
          %163 = sbr.rel (%p161) target = $region32
        $region31: #{tpu_custom_call.1} parent=27 // pred_region
          %164 = dma.done [#allocation5], 32
        $region32: #{tpu_custom_call.1} parent=27 // pred_fallthru
          _
        %s165 = sand.u32 %s63, 1
        %s166 = scalar_lea.sflag [#allocation3], %s165
        %s167 = sand.u32 %s63, 1
        %s168 = smul.addr %s167, 6
        %s169 = scalar_lea.vmem [#allocation6], %s168
        // Predicated region
        $region33: #{tpu_custom_call.1} parent=27 // pred_check
          %p170 = pneg %p76
        $region34: #{tpu_custom_call.1} parent=27 // pred_check_branch
          %172 = sbr.rel (%p170) target = $region36
        $region35: #{tpu_custom_call.1} parent=27 // pred_region
          %173 = dma.done %s166, 96
        $region36: #{tpu_custom_call.1} parent=27 // pred_fallthru
          _
        %174 = sfence
        %p175 = pneg %p48
        %p176 = pneg %p45
        %s177 = sand.u32 %s63, 1
        %s178 = scalar_lea.sflag [#allocation3], %s177
        %s179 = sand.u32 %s63, 1
        %s180 = smul.addr %s179, 6
        %s181 = scalar_lea.vmem [#allocation6], %s180
        %p182 = pneg %p76
        %p183 = pneg %p73
        %p184 = pneg %p104
        %p185 = pneg %p101
        %s186 = sand.u32 %s91, 1
        %s187 = scalar_lea.sflag [#allocation4], %s186
        %s188 = sand.u32 %s91, 1
        %s189 = smul.addr %s188, 6
        %s190 = scalar_lea.vmem [#allocation7], %s189
        %v191 = vld [vmem:[%s169] sm:$0x3]
        %s192 = scalar_lea.vmem %s169, 2 [#allocation6]
        %v193 = vld [vmem:[%s192] sm:$0x3]
        %s194 = scalar_lea.vmem %s169, 4 [#allocation6]
        %v195 = vld [vmem:[%s194] sm:$0x3]
        %s196 = smul.u32 %s24, 128
        %s197 = sld [smem:[#allocation2 + %s196]]
        %v198 = vstv %s197
        %v199 = vmul.f32 %v198, %v191
        %s200 = sadd.s32 %s196, 3
        %s201 = sld [smem:[#allocation2 + %s200]]
        %v202 = vstv %s201
        %v203 = vmul.f32 %v202, %v193
        %v204 = vadd.f32 %v199, %v203
        %s205 = sadd.s32 %s196, 6
        %s206 = sld [smem:[#allocation2 + %s205]]
        %v207 = vstv %s206
        %v208 = vmul.f32 %v207, %v195
        %v209 = vadd.f32 %v204, %v208
        %s210 = sadd.s32 %s196, 1
        %s211 = sld [smem:[#allocation2 + %s210]]
        %v212 = vstv %s211
        %v213 = vmul.f32 %v212, %v191
        %s214 = sadd.s32 %s196, 4
        %s215 = sld [smem:[#allocation2 + %s214]]
        %v216 = vstv %s215
        %v217 = vmul.f32 %v216, %v193
        %v218 = vadd.f32 %v213, %v217
        %s219 = sadd.s32 %s196, 7
        %s220 = sld [smem:[#allocation2 + %s219]]
        %v221 = vstv %s220
        %v222 = vmul.f32 %v221, %v195
        %v223 = vadd.f32 %v218, %v222
        %s224 = sadd.s32 %s196, 2
        %s225 = sld [smem:[#allocation2 + %s224]]
        %v226 = vstv %s225
        %v227 = vmul.f32 %v226, %v191
        %s228 = sadd.s32 %s196, 5
        %s229 = sld [smem:[#allocation2 + %s228]]
        %v230 = vstv %s229
        %v231 = vmul.f32 %v230, %v193
        %v232 = vadd.f32 %v227, %v231
        %s233 = sadd.s32 %s196, 8
        %s234 = sld [smem:[#allocation2 + %s233]]
        %v235 = vstv %s234
        %v236 = vmul.f32 %v235, %v195
        %v237 = vadd.f32 %v232, %v236
        %238 = vst [vmem:[%s190] sm:$0x3] %v209
        %s239 = scalar_lea.vmem %s190, 2 [#allocation7]
        %240 = vst [vmem:[%s239] sm:$0x3] %v223
        %s241 = scalar_lea.vmem %s190, 4 [#allocation7]
        %242 = vst [vmem:[%s241] sm:$0x3] %v237
        %s243 = sand.u32 %s91, 1
        %s244 = scalar_lea.sflag [#allocation4], %s243
        %s245 = sand.u32 %s91, 1
        %s246 = smul.addr %s245, 6
        %s247 = scalar_lea.vmem [#allocation7], %s246
        // Predicated region
        $region37: #{tpu_custom_call.1} parent=27 // pred_check
          %p248 = pneg %p101
        $region38: #{tpu_custom_call.1} parent=27 // pred_check_branch
          %250 = sbr.rel (%p248) target = $region40
        $region39: #{tpu_custom_call.1} parent=27 // pred_region
          %s252 = ssub.s32 96, 96
          %253 = vsyncadd %s244, %s252
          %s254 = smul.addr %s24, 3
          %s255 = sadd.s32 %s25, %s254
          %s256 = smul.addr %s255, 32
          %s257 = scalar_lea.hbm %s2, %s256
          %s258 = sshll.u32 %s247, 4
          %s259 = int_to_ptr.vmem [resolvable:$true] %s258
          %264 = dma.vmem_to_hbm [thread:$0]  %s259, 96, %s257, %s244, 32, 32, 2
        $region40: #{tpu_custom_call.1} parent=27 // pred_fallthru
          _
      $region28: #{tpu_custom_call.1} parent=5 // pred_fallthru
        _
      %p265 = scmp.le.s32.totalorder 2, %s15
      // Predicated region
      $region41: #{tpu_custom_call.1} parent=5 // pred_check
        %p266 = pneg %p265
      $region42: #{tpu_custom_call.1} parent=5 // pred_check_branch
        %268 = sbr.rel (%p266) target = $region44
      $region43: #{tpu_custom_call.1} parent=5 // pred_region
        %s269 = ssub.s32 %s15, 2
        // Predicated region
        $region45: #{tpu_custom_call.1} parent=43 // pred_check
          %p270 = pneg %p107
        $region46: #{tpu_custom_call.1} parent=43 // pred_check_branch
          %272 = sbr.rel (%p270) target = $region48
        $region47: #{tpu_custom_call.1} parent=43 // pred_region
          %s273 = sand.u32 %s92, 1
          %s274 = scalar_lea.sflag [#allocation4], %s273
          %s275 = sand.u32 %s92, 1
          %s276 = smul.addr %s275, 6
          %s277 = scalar_lea.vmem [#allocation7], %s276
          %278 = dma.done %s274, 96
        $region48: #{tpu_custom_call.1} parent=43 // pred_fallthru
          _
      $region44: #{tpu_custom_call.1} parent=5 // pred_fallthru
        _
    $region6: #{tpu_custom_call.1} parent=1 // loop_footer
      %s19 = sadd.s32 1, %s15
    $region7: #{tpu_custom_call.1} parent=1 // loop_footer_branch
      %14 = sbr.rel target = $region3
    $region8: #{tpu_custom_call.1} parent=1 // loop_exit
      _
    %279 = vsyncpa [#allocation3], 1
    %s280 = scalar_lea.sflag [#allocation3], 1
    %281 = vsyncpa %s280, 1
    %282 = vsyncpa [#allocation4], 1
    %s283 = scalar_lea.sflag [#allocation4], 1
    %284 = vsyncpa %s283, 1
    %285 = vsyncpa [#allocation5], 1
    %s286 = scalar_lea.sflag [#allocation5], 1
    %287 = vsyncpa %s286, 1

</llo_original>
